<compile_context>
chip_gen: v7x
topology: tpu7x:2x2x1
jax: 0.10.0
libtpu: 0.0.40
codegen_flags: <defaults>
</compile_context>

<pallas_src>
import functools

import jax
import jax.numpy as jnp
from jax.experimental import pallas as pl
from jax.experimental.pallas import tpu as pltpu

EPS = 1e-5
_LANE = 128
_SUBLANE = 8


def _round_up(x, m):
    return (x + m - 1) // m * m


def _vmem_budget():
    """Generation-aware sizing: (tile-working-set budget, scoped vmem limit)."""
    try:
        cap = int(pltpu.get_tpu_info().vmem_capacity_bytes)
    except Exception:
        cap = 64 * 1024 * 1024  # v7x per-TC physical VMEM (smallest of the targets)
    limit = min(int(cap * 0.70), 80 * 1024 * 1024)
    budget = int(limit * 0.55)  # double-buffered blocks + live f32 temps fit here
    return budget, limit


def _choose_full_n_td(n, d, in_item, out_item, budget):
    """Lane width TD for the single-pass full-N-stripe kernel; None -> two-pass."""
    # Per-column bytes: double-buffered in/out blocks + ~2 live (N, TD) f32 temps.
    per_col = n * (2 * in_item + 2 * out_item + 2 * 4)
    if d < _LANE:
        # Single block whose lane dim equals the full array dim (allowed).
        return d if d * per_col <= budget else None
    d_ceil = _round_up(d, _LANE)
    if d_ceil < 2 * _LANE:
        td_cap = _LANE
    else:
        # >= 2 feature stripes so the "parallel" grid axis can use both v7x TCs.
        td_cap = max(_LANE, (d_ceil // 2) // _LANE * _LANE)
    td_cap = min(td_cap, 2048)
    td_fit = (budget // per_col) // _LANE * _LANE
    if td_fit < _LANE:
        return None
    return min(td_cap, td_fit)


# ----------------------------------------------------------------------------
# Path A: full-N feature stripes, single pass.
# ----------------------------------------------------------------------------
def _bn_full_n_kernel(x_ref, gamma_ref, beta_ref, o_ref, *, n):
    # x_ref: (N, TD), gamma/beta: (1, TD), o_ref: (N, TD)
    x = x_ref[...].astype(jnp.float32)
    inv_n = 1.0 / n
    mean = jnp.sum(x, axis=0, keepdims=True) * inv_n
    mean_sq = jnp.sum(x * x, axis=0, keepdims=True) * inv_n
    var = jnp.maximum(mean_sq - mean * mean, 0.0)  # clamp: cancellation safety
    inv_std = jax.lax.rsqrt(var + EPS)
    scale = inv_std * gamma_ref[...].astype(jnp.float32)
    shift = beta_ref[...].astype(jnp.float32) - mean * scale
    o_ref[...] = (x * scale + shift).astype(o_ref.dtype)


def _full_n_call(x, gamma2d, beta2d, td, limit):
    n, d = x.shape
    grid = (pl.cdiv(d, td),)
    item = x.dtype.itemsize
    cost = pl.CostEstimate(
        flops=7 * n * d,
        transcendentals=d,
        bytes_accessed=2 * n * d * item + 2 * d * 4,
    )
    return pl.pallas_call(
        functools.partial(_bn_full_n_kernel, n=n),
        out_shape=jax.ShapeDtypeStruct((n, d), x.dtype),
        grid=grid,
        in_specs=[
            pl.BlockSpec((n, td), lambda j: (0, j)),
            pl.BlockSpec((1, td), lambda j: (0, j)),
            pl.BlockSpec((1, td), lambda j: (0, j)),
        ],
        out_specs=pl.BlockSpec((n, td), lambda j: (0, j)),
        compiler_params=pltpu.CompilerParams(
            dimension_semantics=("parallel",),
            vmem_limit_bytes=limit,
        ),
        cost_estimate=cost,
    )(x, gamma2d, beta2d)


# ----------------------------------------------------------------------------
# Path B: large N -> two passes (stats with scratch accumulators, then apply).
# ----------------------------------------------------------------------------
def _bn_stats_kernel(x_ref, gamma_ref, beta_ref, scale_ref, shift_ref,
                     sum_sc, sq_sc, *, n, mask_rows):
    ni = pl.program_id(1)

    @pl.when(ni == 0)
    def _():
        sum_sc[...] = jnp.zeros_like(sum_sc)
        sq_sc[...] = jnp.zeros_like(sq_sc)

    x = x_ref[...].astype(jnp.float32)
    if mask_rows:  # static: only when N % TN != 0 (zero out the partial tile's rows)
        tn = x.shape[0]
        row = jax.lax.broadcasted_iota(jnp.int32, x.shape, 0) + ni * tn
        x = jnp.where(row < n, x, 0.0)
    sum_sc[...] += jnp.sum(x, axis=0, keepdims=True)
    sq_sc[...] += jnp.sum(x * x, axis=0, keepdims=True)

    @pl.when(ni == pl.num_programs(1) - 1)
    def _():
        inv_n = 1.0 / n
        mean = sum_sc[...] * inv_n
        var = jnp.maximum(sq_sc[...] * inv_n - mean * mean, 0.0)
        scale = jax.lax.rsqrt(var + EPS) * gamma_ref[...].astype(jnp.float32)
        scale_ref[...] = scale
        shift_ref[...] = beta_ref[...].astype(jnp.float32) - mean * scale


def _bn_apply_kernel(x_ref, scale_ref, shift_ref, o_ref):
    o_ref[...] = (x_ref[...].astype(jnp.float32) * scale_ref[...]
                  + shift_ref[...]).astype(o_ref.dtype)


def _two_pass_call(x, gamma2d, beta2d, budget, limit, max_tn=None):
    n, d = x.shape
    in_item = x.dtype.itemsize
    out_item = x.dtype.itemsize

    td = d if d < _LANE else min(512, (d // _LANE) * _LANE)
    per_row = td * (2 * in_item + 2 * out_item + 2 * 4)
    if n < _SUBLANE:
        tn = n
    else:
        tn = (budget // max(per_row, 1)) // _SUBLANE * _SUBLANE
        tn = max(_SUBLANE, min(tn, (n // _SUBLANE) * _SUBLANE))
    if max_tn is not None:
        tn = max(1, min(tn, max_tn))
    nd = pl.cdiv(d, td)
    nn = pl.cdiv(n, tn)

    stats_cost = pl.CostEstimate(
        flops=4 * n * d, transcendentals=d,
        bytes_accessed=n * d * in_item + 4 * d * 4)
    scale, shift = pl.pallas_call(
        functools.partial(_bn_stats_kernel, n=n, mask_rows=(n % tn != 0)),
        out_shape=(jax.ShapeDtypeStruct((1, d), jnp.float32),
                   jax.ShapeDtypeStruct((1, d), jnp.float32)),
        grid=(nd, nn),
        in_specs=[
            pl.BlockSpec((tn, td), lambda di, ni: (ni, di)),
            pl.BlockSpec((1, td), lambda di, ni: (0, di)),
            pl.BlockSpec((1, td), lambda di, ni: (0, di)),
        ],
        out_specs=(
            pl.BlockSpec((1, td), lambda di, ni: (0, di)),
            pl.BlockSpec((1, td), lambda di, ni: (0, di)),
        ),
        scratch_shapes=[pltpu.VMEM((1, td), jnp.float32),
                        pltpu.VMEM((1, td), jnp.float32)],
        compiler_params=pltpu.CompilerParams(
            dimension_semantics=("parallel", "arbitrary"),
            vmem_limit_bytes=limit,
        ),
        cost_estimate=stats_cost,
    )(x, gamma2d, beta2d)

    apply_cost = pl.CostEstimate(
        flops=2 * n * d, transcendentals=0,
        bytes_accessed=n * d * (in_item + out_item) + 2 * d * 4)
    return pl.pallas_call(
        _bn_apply_kernel,
        out_shape=jax.ShapeDtypeStruct((n, d), x.dtype),
        grid=(nd, nn),
        in_specs=[
            pl.BlockSpec((tn, td), lambda di, ni: (ni, di)),
            pl.BlockSpec((1, td), lambda di, ni: (0, di)),
            pl.BlockSpec((1, td), lambda di, ni: (0, di)),
        ],
        out_specs=pl.BlockSpec((tn, td), lambda di, ni: (ni, di)),
        compiler_params=pltpu.CompilerParams(
            dimension_semantics=("parallel", "parallel"),
            vmem_limit_bytes=limit,
        ),
        cost_estimate=apply_cost,
    )(x, scale, shift)


# ----------------------------------------------------------------------------
# Public entry point.
# ----------------------------------------------------------------------------
def linear_batchnorm(x, gamma, beta, *, force_two_pass=False, _max_tn=None):
    """LinearBatchNorm forward. x: (N, D); gamma, beta: (D,). Returns (N, D)."""
    n, d = x.shape
    gamma2d = gamma.reshape(1, d).astype(jnp.float32)
    beta2d = beta.reshape(1, d).astype(jnp.float32)

    budget, limit = _vmem_budget()
    td = None
    if not force_two_pass:
        td = _choose_full_n_td(n, d, x.dtype.itemsize, x.dtype.itemsize, budget)
    if td is None:
        return _two_pass_call(x, gamma2d, beta2d, budget, limit, max_tn=_max_tn)
    return _full_n_call(x, gamma2d, beta2d, td, limit)


def _reference(x, gamma, beta):
    x32 = x.astype(jnp.float32)
    mean = jnp.mean(x32, axis=0, keepdims=True)
    var = jnp.mean((x32 - mean) ** 2, axis=0, keepdims=True)
    y = (x32 - mean) / jnp.sqrt(var + EPS) * gamma[None, :] + beta[None, :]
    return y.astype(x.dtype)


if __name__ == "__main__":
    key = jax.random.PRNGKey(0)
    k_x, k_g, k_b, k_x2 = jax.random.split(key, 4)

    # Primary shape implied by the module: x.view(-1, dim) with batch=8, dim=32.
    N, DIM = 8, 32
    x = jax.random.normal(k_x, (N, DIM), dtype=jnp.float32)
    gamma = 1.0 + 0.1 * jax.random.normal(k_g, (DIM,), dtype=jnp.float32)
    beta = 0.1 * jax.random.normal(k_b, (DIM,), dtype=jnp.float32)

    out = jax.block_until_ready(linear_batchnorm(x, gamma, beta))
    ref = _reference(x, gamma, beta)
    assert out.shape == (N, DIM) and out.dtype == x.dtype
    assert jnp.allclose(out, ref, atol=1e-5, rtol=1e-5), "single-pass mismatch"

    # D % 128 != 0, D > 128: exercises the cdiv grid / masked partial lane tile
    # (no wrapper-side padding or output slicing).
    N2, D2 = 16, 200
    x2 = jax.random.normal(k_x2, (N2, D2), dtype=jnp.float32)
    g2 = jnp.linspace(0.5, 1.5, D2, dtype=jnp.float32)
    b2 = jnp.linspace(-0.2, 0.2, D2, dtype=jnp.float32)
    out2 = jax.block_until_ready(linear_batchnorm(x2, g2, b2))
    assert jnp.allclose(out2, _reference(x2, g2, b2), atol=1e-5, rtol=1e-5), \
        "partial-tile mismatch"

    # Large-N fallback path forced at a small shape: 2D grid, scratch
    # accumulators, partial N tile + row masking.
    N3, D3 = 20, 200
    x3 = jax.random.normal(jax.random.PRNGKey(3), (N3, D3), dtype=jnp.float32)
    out3 = jax.block_until_ready(
        linear_batchnorm(x3, g2, b2, force_two_pass=True, _max_tn=8))
    assert jnp.allclose(out3, _reference(x3, g2, b2), atol=1e-5, rtol=1e-5), \
        "two-pass mismatch"

    print("KERNEL_OK")
</pallas_src>

<mosaic_0001>
module attributes {stable_mosaic.version = 11 : i64} {
  func.func @_bn_full_n_kernel(%arg0: i32, %arg1: memref<8x32xf32, #tpu.memory_space<vmem>>, %arg2: memref<1x32xf32, #tpu.memory_space<vmem>>, %arg3: memref<1x32xf32, #tpu.memory_space<vmem>>, %arg4: memref<8x32xf32, #tpu.memory_space<vmem>>) attributes {dimension_semantics = [#tpu.dimension_semantics<parallel>], iteration_bounds = array<i64: 1>, scalar_prefetch = 0 : i64, scratch_operands = 0 : i64, tpu.core_type = #tpu.core_type<tc>, window_params = [{transform_indices = @transform_0, window_bounds = array<i64: 8, 32>}, {transform_indices = @transform_1, window_bounds = array<i64: 1, 32>}, {transform_indices = @transform_2, window_bounds = array<i64: 1, 32>}, {transform_indices = @transform_3, window_bounds = array<i64: 8, 32>}]} {
    %c0 = arith.constant 0 : index
    %c0_0 = arith.constant 0 : index
    %0 = vector.load %arg1[%c0, %c0_0] : memref<8x32xf32, #tpu.memory_space<vmem>>, vector<8x32xf32>
    %cst = arith.constant dense<0.000000e+00> : vector<32xf32>
    %1 = vector.multi_reduction <add>, %0, %cst [0] : vector<8x32xf32> to vector<32xf32>
    %2 = vector.shape_cast %1 : vector<32xf32> to vector<1x32xf32>
    %cst_1 = arith.constant 1.250000e-01 : f32
    %3 = vector.broadcast %cst_1 : f32 to vector<1x32xf32>
    %4 = arith.mulf %2, %3 : vector<1x32xf32>
    %5 = arith.mulf %0, %0 : vector<8x32xf32>
    %cst_2 = arith.constant dense<0.000000e+00> : vector<32xf32>
    %6 = vector.multi_reduction <add>, %5, %cst_2 [0] : vector<8x32xf32> to vector<32xf32>
    %7 = vector.shape_cast %6 : vector<32xf32> to vector<1x32xf32>
    %cst_3 = arith.constant 1.250000e-01 : f32
    %8 = vector.broadcast %cst_3 : f32 to vector<1x32xf32>
    %9 = arith.mulf %7, %8 : vector<1x32xf32>
    %10 = arith.mulf %4, %4 : vector<1x32xf32>
    %11 = arith.subf %9, %10 : vector<1x32xf32>
    %cst_4 = arith.constant 0.000000e+00 : f32
    %12 = vector.broadcast %cst_4 : f32 to vector<1x32xf32>
    %13 = arith.maximumf %11, %12 : vector<1x32xf32>
    %cst_5 = arith.constant 9.99999974E-6 : f32
    %14 = vector.broadcast %cst_5 : f32 to vector<1x32xf32>
    %15 = arith.addf %13, %14 : vector<1x32xf32>
    %16 = math.rsqrt %15 : vector<1x32xf32>
    %c0_6 = arith.constant 0 : index
    %c0_7 = arith.constant 0 : index
    %17 = vector.load %arg2[%c0_6, %c0_7] : memref<1x32xf32, #tpu.memory_space<vmem>>, vector<1x32xf32>
    %18 = arith.mulf %16, %17 : vector<1x32xf32>
    %c0_8 = arith.constant 0 : index
    %c0_9 = arith.constant 0 : index
    %19 = vector.load %arg3[%c0_8, %c0_9] : memref<1x32xf32, #tpu.memory_space<vmem>>, vector<1x32xf32>
    %20 = arith.mulf %4, %18 : vector<1x32xf32>
    %21 = arith.subf %19, %20 : vector<1x32xf32>
    %22 = vector.broadcast %18 : vector<1x32xf32> to vector<8x32xf32>
    %23 = arith.mulf %0, %22 : vector<8x32xf32>
    %24 = vector.broadcast %21 : vector<1x32xf32> to vector<8x32xf32>
    %25 = arith.addf %23, %24 : vector<8x32xf32>
    %c0_10 = arith.constant 0 : index
    %c0_11 = arith.constant 0 : index
    %26 = vector.load %arg4[%c0_10, %c0_11] : memref<8x32xf32, #tpu.memory_space<vmem>>, vector<8x32xf32>
    tpu.vector_store %arg4[%c0_10, %c0_11], %25 {strides = array<i32>} : memref<8x32xf32, #tpu.memory_space<vmem>>, vector<8x32xf32>,
    return
  }
  func.func @transform_0(%arg0: i32) -> (i32, i32) {
    %c0_i32 = arith.constant 0 : i32
    %c0_i32_0 = arith.constant 0 : i32
    return %c0_i32, %arg0 : i32, i32
  }
  func.func @transform_1(%arg0: i32) -> (i32, i32) {
    %c0_i32 = arith.constant 0 : i32
    %c0_i32_0 = arith.constant 0 : i32
    return %c0_i32, %arg0 : i32, i32
  }
  func.func @transform_2(%arg0: i32) -> (i32, i32) {
    %c0_i32 = arith.constant 0 : i32
    %c0_i32_0 = arith.constant 0 : i32
    return %c0_i32, %arg0 : i32, i32
  }
  func.func @transform_3(%arg0: i32) -> (i32, i32) {
    %c0_i32 = arith.constant 0 : i32
    %c0_i32_0 = arith.constant 0 : i32
    return %c0_i32, %arg0 : i32, i32
  }
}

</mosaic_0001>

<llo_original>
// kernel: tpu_custom_call.1
$region0: #{tpu_custom_call.1}
  #allocation0 [shape = 'u32[]', space=smem, size = 0x4, offset = 0x4, fixed_abs, tag = 'smem constant byte address 0x4 - core index']
  #allocation1 [shape = 'u32[144,128]{1,0:T(1,128)}', space=vmem, size = 0x12000, scoped, tag = 'internal scratch']
  %s0 = inlined_call_operand.hbm [shape: f32[8,32], index: 0, kind: input, shape index: {}]
  %s1 = inlined_call_operand.vmem [shape: f32[1,32], index: 1, kind: input, shape index: {}]
  %s2 = inlined_call_operand.vmem [shape: f32[1,32], index: 2, kind: input, shape index: {}]
  %s3 = inlined_call_operand.hbm [shape: f32[8,32], index: 3, kind: output, shape index: {}]
  %s4 = sld [smem:[#allocation0]]
  $region26: #{tpu_custom_call.1} parent=0
    _
  %s6 = ssub.s32 1, %s4
  %s7 = scalar_select 0, %s6, %s4
  $region1: #{tpu_custom_call.1} parent=0
    #allocation2 [shape = 'u8[4096]{0}', space=vmem, size = 0x1000, scoped, tag = 'input window, operand 0, single buffered']
    #allocation3 [shape = 's32[1]{0}', space=sflag, size = 0x4, scoped, tag = 'scoped memory for tpu_custom_call.1']
    #allocation4 [shape = 's32[1]{0}', space=sflag, size = 0x4, scoped, tag = 'scoped memory for tpu_custom_call.1']
    #allocation5 [shape = 'u8[4096]{0}', space=vmem, size = 0x1000, scoped, tag = 'output window, operand 0, single buffered']
    %8 = vsyncpa [#allocation3], 0
    %9 = vsyncpa [#allocation4], 0
    // Predicated region
    $region2: #{tpu_custom_call.1} parent=1 // pred_check
      _
    $region3: #{tpu_custom_call.1} parent=1 // pred_check_branch
      %11 = sbr.rel (0) target = $region5
    $region4: #{tpu_custom_call.1} parent=1 // pred_region
      %s13 = ssub.s32 128, 128
      %14 = vsyncadd [#allocation3], %s13
      %s16 = sshll.u32 [#allocation2], 4
      %s17 = int_to_ptr.vmem [resolvable:$true] %s16
      %19 = dma.hbm_to_vmem [thread:$0]  %s0, 128, %s17, [#allocation3]
    $region5: #{tpu_custom_call.1} parent=1 // pred_fallthru
      _
    // Predicated region
    $region6: #{tpu_custom_call.1} parent=1 // pred_check
      _
    $region7: #{tpu_custom_call.1} parent=1 // pred_check_branch
      %21 = sbr.rel (0) target = $region9
    $region8: #{tpu_custom_call.1} parent=1 // pred_region
      _
    $region9: #{tpu_custom_call.1} parent=1 // pred_fallthru
      _
    // Predicated region
    $region10: #{tpu_custom_call.1} parent=1 // pred_check
      _
    $region11: #{tpu_custom_call.1} parent=1 // pred_check_branch
      %23 = sbr.rel (0) target = $region13
    $region12: #{tpu_custom_call.1} parent=1 // pred_region
      _
    $region13: #{tpu_custom_call.1} parent=1 // pred_fallthru
      _
    // Predicated region
    $region14: #{tpu_custom_call.1} parent=1 // pred_check
      _
    $region15: #{tpu_custom_call.1} parent=1 // pred_check_branch
      %25 = sbr.rel (0) target = $region17
    $region16: #{tpu_custom_call.1} parent=1 // pred_region
      %26 = dma.done [#allocation3], 128
    $region17: #{tpu_custom_call.1} parent=1 // pred_fallthru
      _
    %v27 = vld [vmem:[#allocation2] sm:$0xff]
    %vm28 = vcmask 261120
    %v29 = vsel %vm28, %v27, 0.0
    %v30 = vrot.slane %v29, 4
    %v31 = vadd.f32 %v29, %v30
    %v32 = vrot.slane %v31, 2
    %v33 = vadd.f32 %v31, %v32
    %v34 = vrot.slane %v33, 1
    %v35 = vadd.f32 %v33, %v34
    %v36 = vmul.f32 %v35, 0.125
    %v37 = vmul.f32 %v27, %v27
    %v38 = vsel %vm28, %v37, 0.0
    %v39 = vrot.slane %v38, 4
    %v40 = vadd.f32 %v38, %v39
    %v41 = vrot.slane %v40, 2
    %v42 = vadd.f32 %v40, %v41
    %v43 = vrot.slane %v42, 1
    %v44 = vadd.f32 %v42, %v43
    %v45 = vmul.f32 %v44, 0.125
    %v46 = vmul.f32 %v36, %v36
    %v47 = vsub.f32 %v45, %v46
    %v48 = vmax.f32 %v47, 0.0
    %v49 = vadd.f32 %v48, 1e-05
    %v50 = vrsqrt.pop %v49
    %v51 = vld [vmem:[%s1] sm:$0x1]
    %v52 = vmul.f32 %v50, %v51
    %v53 = vld [vmem:[%s2] sm:$0x1]
    %v54 = vmul.f32 %v36, %v52
    %v55 = vsub.f32 %v53, %v54
    %v56 = vlaneseq
    %v57 = vshrl.u32 %v56, 7
    %v58 = vsub.s32 0, %v57
    %v59 = vrot.slane %v52, %v58
    %v60 = vmul.f32 %v27, %v59
    %v62 = vlaneseq
    %v63 = vshrl.u32 %v62, 7
    %v64 = vsub.s32 0, %v63
    %v65 = vrot.slane %v55, %v64
    %v67 = vadd.f32 %v60, %v65
    %68 = vst.msk [vmem:[#allocation5] sm:$0xff] %vm28, %v67
    // Predicated region
    $region18: #{tpu_custom_call.1} parent=1 // pred_check
      _
    $region19: #{tpu_custom_call.1} parent=1 // pred_check_branch
      %70 = sbr.rel (0) target = $region21
    $region20: #{tpu_custom_call.1} parent=1 // pred_region
      %s72 = ssub.s32 128, 128
      %73 = vsyncadd [#allocation4], %s72
      %s75 = sshll.u32 [#allocation5], 4
      %s76 = int_to_ptr.vmem [resolvable:$true] %s75
      %78 = dma.vmem_to_hbm [thread:$0]  %s76, 128, %s3, [#allocation4]
    $region21: #{tpu_custom_call.1} parent=1 // pred_fallthru
      _
    // Predicated region
    $region22: #{tpu_custom_call.1} parent=1 // pred_check
      _
    $region23: #{tpu_custom_call.1} parent=1 // pred_check_branch
      %80 = sbr.rel (0) target = $region25
    $region24: #{tpu_custom_call.1} parent=1 // pred_region
      %81 = dma.done [#allocation4], 128
    $region25: #{tpu_custom_call.1} parent=1 // pred_fallthru
      _
    %82 = vsyncpa [#allocation3], 1
    %83 = vsyncpa [#allocation4], 1

</llo_original>
